<compile_context>
chip_gen: v7x
topology: tpu7x:2x2x1
jax: 0.10.0
libtpu: 0.0.40
codegen_flags: <defaults>
</compile_context>

<pallas_src>
import functools

import jax
import jax.numpy as jnp
from jax.experimental import pallas as pl
from jax.experimental.pallas import tpu as pltpu

EF_FEATURES = 32
IN_FEATURES = EF_FEATURES * 64  # 2048, fixed by the module


def _planes_kernel(code_ref, w_ref, b_ref, ptsT_ref, distT_ref, par_ref,
                   *, num_planes: int, num_dims: int, tile_b: int):
    """Per-B-tile body.

    code_ref:  (TB, F)        w_ref: (F, P*C)     b_ref: (1, P*C)
    ptsT_ref:  (TB, D, N)     distT_ref: (TB, P, N)   par_ref: (TB, P*C)
    with C = D + 1.
    """
    P, D, TB = num_planes, num_dims, tile_b
    C = D + 1

    # Linear layer for the whole batch tile in ONE MXU matmul (M = TB).
    p2d = jnp.dot(code_ref[...], w_ref[...],
                  preferred_element_type=jnp.float32)
    p2d = p2d + b_ref[...]                                   # (TB, P*C)

    # Raw (flat) parameters out; the wrapper reshapes to (B, P, C) for free.
    par_ref[...] = p2d

    # Per-batch plane evaluation with N on the lane axis:
    #   distT[b] = A_b @ ptsT_b + offs_b
    # done as D broadcast multiply-adds on the VPU (K=D=3 is too small for the
    # MXU to be worthwhile).  TB is kept small enough for a static unroll.
    for b in range(TB):
        row = p2d[b:b + 1, :]                                # (1, P*C)
        params_b = jnp.concatenate(
            [row[:, p * C:(p + 1) * C] for p in range(P)], axis=0)  # (P, C)
        ptsT_b = ptsT_ref[b]                                 # (D, N)
        acc = params_b[:, D:]                                # (P, 1) plane offsets
        for d in range(D):
            acc = acc + params_b[:, d:d + 1] * ptsT_b[d:d + 1, :]   # (P, N)
        distT_ref[b] = acc.astype(distT_ref.dtype)


def _pick_batch_tile(batch: int) -> int:
    """Choose the B-tile size: whole batch when small, else a divisor tile."""
    if batch <= 32:
        return batch
    for tb in (256, 128, 64, 32, 16, 8):
        if batch % tb == 0:
            return tb
    return batch  # fallback: single tile covering all of B


def planes_evaluator_forward(code, points, weight, bias,
                             num_planes: int, num_dims: int):
    """Pallas equivalent of PlanesEvaluator.forward.

    code:   (B, F=2048) float32
    points: (B, N, D)   float32
    weight: (F, P*(D+1))  (transposed vs. torch's (out, in))
    bias:   (P*(D+1),)
    Returns (distances (B, N, P), parameters (B, P, D+1)).
    """
    B, F = code.shape
    N, D = points.shape[1], points.shape[2]
    assert D == num_dims
    P, C = num_planes, num_dims + 1
    PC = P * C

    TB = _pick_batch_tile(B)
    assert B % TB == 0
    nb = B // TB

    # Lane-dense layouts for the kernel: N on the last (lane) axis.
    ptsT = jnp.swapaxes(points, 1, 2)          # (B, D, N)
    bias2 = bias.reshape(1, PC)

    kernel = functools.partial(_planes_kernel,
                               num_planes=P, num_dims=D, tile_b=TB)

    distT, par_flat = pl.pallas_call(
        kernel,
        out_shape=(
            jax.ShapeDtypeStruct((B, P, N), jnp.float32),    # distances^T
            jax.ShapeDtypeStruct((B, PC), jnp.float32),      # flat parameters
        ),
        grid=(nb,),
        in_specs=[
            pl.BlockSpec((TB, F), lambda i: (i, 0)),         # code tile
            pl.BlockSpec((F, PC), lambda i: (0, 0)),         # weight (resident)
            pl.BlockSpec((1, PC), lambda i: (0, 0)),         # bias   (resident)
            pl.BlockSpec((TB, D, N), lambda i: (i, 0, 0)),   # points^T tile
        ],
        out_specs=(
            pl.BlockSpec((TB, P, N), lambda i: (i, 0, 0)),   # distances^T tile
            pl.BlockSpec((TB, PC), lambda i: (i, 0)),        # flat params tile
        ),
        compiler_params=pltpu.CompilerParams(
            dimension_semantics=("parallel",)),
    )(code, weight, bias2, ptsT)

    distances = jnp.swapaxes(distT, 1, 2)      # (B, N, P), as in the module
    parameters = par_flat.reshape(B, P, C)     # (B, P, C) == last_predicted_parameters
    return distances, parameters


def _reference_forward(code, points, weight, bias, num_planes, num_dims):
    B = code.shape[0]
    C = num_dims + 1
    params = (code @ weight + bias).reshape(B, num_planes, C)
    ones = jnp.ones(points.shape[:-1] + (1,), dtype=points.dtype)
    ext = jnp.concatenate([points, ones], axis=-1)
    dist = jnp.einsum("bnc,bpc->bnp", ext, params)
    return dist, params


if __name__ == "__main__":
    # Module config + small input shapes implied by the forward pass.
    num_planes = 4
    num_dims = 3
    B, N, F = 2, 8, IN_FEATURES

    key = jax.random.PRNGKey(0)
    k_code, k_pts, k_w, k_b = jax.random.split(key, 4)

    code = jax.random.normal(k_code, (B, F), dtype=jnp.float32)
    points = jax.random.normal(k_pts, (B, N, num_dims), dtype=jnp.float32)

    # Deterministic parameter init (~ torch.nn.Linear default scale).
    out_features = num_planes * (num_dims + 1)
    bound = 1.0 / (F ** 0.5)
    weight = jax.random.uniform(k_w, (F, out_features),
                                minval=-bound, maxval=bound,
                                dtype=jnp.float32)
    bias = jax.random.uniform(k_b, (out_features,),
                              minval=-bound, maxval=bound, dtype=jnp.float32)

    dist, params = planes_evaluator_forward(code, points, weight, bias,
                                            num_planes, num_dims)
    jax.block_until_ready((dist, params))

    dist_ref, params_ref = _reference_forward(code, points, weight, bias,
                                              num_planes, num_dims)
    if not (jnp.allclose(dist, dist_ref, atol=1e-4, rtol=1e-4) and
            jnp.allclose(params, params_ref, atol=1e-4, rtol=1e-4)):
        raise AssertionError("Pallas kernel output mismatch vs reference")

    print("KERNEL_OK")
</pallas_src>

<mosaic_0001>
module attributes {stable_mosaic.version = 11 : i64} {
  func.func @_planes_kernel(%arg0: i32, %arg1: memref<2x2048xf32, #tpu.memory_space<vmem>>, %arg2: memref<2048x16xf32, #tpu.memory_space<vmem>>, %arg3: memref<1x16xf32, #tpu.memory_space<vmem>>, %arg4: memref<2x3x8xf32, #tpu.memory_space<vmem>>, %arg5: memref<2x4x8xf32, #tpu.memory_space<vmem>>, %arg6: memref<2x16xf32, #tpu.memory_space<vmem>>) attributes {dimension_semantics = [#tpu.dimension_semantics<parallel>], iteration_bounds = array<i64: 1>, scalar_prefetch = 0 : i64, scratch_operands = 0 : i64, tpu.core_type = #tpu.core_type<tc>, window_params = [{transform_indices = @transform_0, window_bounds = array<i64: 2, 2048>}, {pipeline_mode = #tpu.pipeline_mode<synchronous>, transform_indices = @transform_1, window_bounds = array<i64: 2048, 16>}, {pipeline_mode = #tpu.pipeline_mode<synchronous>, transform_indices = @transform_2, window_bounds = array<i64: 1, 16>}, {transform_indices = @transform_3, window_bounds = array<i64: 2, 3, 8>}, {transform_indices = @transform_4, window_bounds = array<i64: 2, 4, 8>}, {transform_indices = @transform_5, window_bounds = array<i64: 2, 16>}]} {
    %c0 = arith.constant 0 : index
    %c0_0 = arith.constant 0 : index
    %0 = vector.load %arg1[%c0, %c0_0] : memref<2x2048xf32, #tpu.memory_space<vmem>>, vector<2x2048xf32>
    %c0_1 = arith.constant 0 : index
    %c0_2 = arith.constant 0 : index
    %1 = vector.load %arg2[%c0_1, %c0_2] : memref<2048x16xf32, #tpu.memory_space<vmem>>, vector<2048x16xf32>
    %cst = arith.constant dense<0.000000e+00> : vector<2x16xf32>
    %2 = tpu.matmul %0, %1, %cst {dimension_numbers = #tpu.dot_dimension_numbers<[1], [0], [0], [1], [0, 0, 1, 1], [], []>} : vector<2x2048xf32>, vector<2048x16xf32>, vector<2x16xf32> -> vector<2x16xf32>
    %c0_3 = arith.constant 0 : index
    %c0_4 = arith.constant 0 : index
    %3 = vector.load %arg3[%c0_3, %c0_4] : memref<1x16xf32, #tpu.memory_space<vmem>>, vector<1x16xf32>
    %4 = vector.broadcast %3 : vector<1x16xf32> to vector<2x16xf32>
    %5 = arith.addf %2, %4 : vector<2x16xf32>
    %c0_5 = arith.constant 0 : index
    %c0_6 = arith.constant 0 : index
    %6 = vector.load %arg6[%c0_5, %c0_6] : memref<2x16xf32, #tpu.memory_space<vmem>>, vector<2x16xf32>
    tpu.vector_store %arg6[%c0_5, %c0_6], %5 {strides = array<i32>} : memref<2x16xf32, #tpu.memory_space<vmem>>, vector<2x16xf32>,
    %7 = vector.extract_strided_slice %5 {offsets = [0, 0], sizes = [1, 16], strides = [1, 1]} : vector<2x16xf32> to vector<1x16xf32>
    %8 = vector.extract_strided_slice %7 {offsets = [0, 0], sizes = [1, 4], strides = [1, 1]} : vector<1x16xf32> to vector<1x4xf32>
    %9 = vector.extract_strided_slice %7 {offsets = [0, 4], sizes = [1, 4], strides = [1, 1]} : vector<1x16xf32> to vector<1x4xf32>
    %10 = vector.extract_strided_slice %7 {offsets = [0, 8], sizes = [1, 4], strides = [1, 1]} : vector<1x16xf32> to vector<1x4xf32>
    %11 = vector.extract_strided_slice %7 {offsets = [0, 12], sizes = [1, 4], strides = [1, 1]} : vector<1x16xf32> to vector<1x4xf32>
    %12 = tpu.concatenate %8, %9, %10, %11 in 0 : vector<1x4xf32>, vector<1x4xf32>, vector<1x4xf32>, vector<1x4xf32> -> vector<4x4xf32>
    %c0_7 = arith.constant 0 : index
    %c0_8 = arith.constant 0 : index
    %c0_9 = arith.constant 0 : index
    %13 = vector.load %arg4[%c0_7, %c0_8, %c0_9] : memref<2x3x8xf32, #tpu.memory_space<vmem>>, vector<1x3x8xf32>
    %14 = vector.shape_cast %13 : vector<1x3x8xf32> to vector<3x8xf32>
    %15 = vector.extract_strided_slice %12 {offsets = [0, 3], sizes = [4, 1], strides = [1, 1]} : vector<4x4xf32> to vector<4x1xf32>
    %16 = vector.extract_strided_slice %12 {offsets = [0, 0], sizes = [4, 1], strides = [1, 1]} : vector<4x4xf32> to vector<4x1xf32>
    %17 = vector.extract_strided_slice %14 {offsets = [0, 0], sizes = [1, 8], strides = [1, 1]} : vector<3x8xf32> to vector<1x8xf32>
    %18 = vector.broadcast %16 : vector<4x1xf32> to vector<4x8xf32>
    %19 = vector.broadcast %17 : vector<1x8xf32> to vector<4x8xf32>
    %20 = arith.mulf %18, %19 : vector<4x8xf32>
    %21 = vector.broadcast %15 : vector<4x1xf32> to vector<4x8xf32>
    %22 = arith.addf %21, %20 : vector<4x8xf32>
    %23 = vector.extract_strided_slice %12 {offsets = [0, 1], sizes = [4, 1], strides = [1, 1]} : vector<4x4xf32> to vector<4x1xf32>
    %24 = vector.extract_strided_slice %14 {offsets = [1, 0], sizes = [1, 8], strides = [1, 1]} : vector<3x8xf32> to vector<1x8xf32>
    %25 = vector.broadcast %23 : vector<4x1xf32> to vector<4x8xf32>
    %26 = vector.broadcast %24 : vector<1x8xf32> to vector<4x8xf32>
    %27 = arith.mulf %25, %26 : vector<4x8xf32>
    %28 = arith.addf %22, %27 : vector<4x8xf32>
    %29 = vector.extract_strided_slice %12 {offsets = [0, 2], sizes = [4, 1], strides = [1, 1]} : vector<4x4xf32> to vector<4x1xf32>
    %30 = vector.extract_strided_slice %14 {offsets = [2, 0], sizes = [1, 8], strides = [1, 1]} : vector<3x8xf32> to vector<1x8xf32>
    %31 = vector.broadcast %29 : vector<4x1xf32> to vector<4x8xf32>
    %32 = vector.broadcast %30 : vector<1x8xf32> to vector<4x8xf32>
    %33 = arith.mulf %31, %32 : vector<4x8xf32>
    %34 = arith.addf %28, %33 : vector<4x8xf32>
    %c0_10 = arith.constant 0 : index
    %c0_11 = arith.constant 0 : index
    %c0_12 = arith.constant 0 : index
    %35 = vector.load %arg5[%c0_10, %c0_11, %c0_12] : memref<2x4x8xf32, #tpu.memory_space<vmem>>, vector<1x4x8xf32>
    %36 = vector.shape_cast %35 : vector<1x4x8xf32> to vector<4x8xf32>
    %37 = vector.shape_cast %34 : vector<4x8xf32> to vector<1x4x8xf32>
    tpu.vector_store %arg5[%c0_10, %c0_11, %c0_12], %37 {strides = array<i32>} : memref<2x4x8xf32, #tpu.memory_space<vmem>>, vector<1x4x8xf32>,
    %38 = vector.extract_strided_slice %5 {offsets = [1, 0], sizes = [1, 16], strides = [1, 1]} : vector<2x16xf32> to vector<1x16xf32>
    %39 = vector.extract_strided_slice %38 {offsets = [0, 0], sizes = [1, 4], strides = [1, 1]} : vector<1x16xf32> to vector<1x4xf32>
    %40 = vector.extract_strided_slice %38 {offsets = [0, 4], sizes = [1, 4], strides = [1, 1]} : vector<1x16xf32> to vector<1x4xf32>
    %41 = vector.extract_strided_slice %38 {offsets = [0, 8], sizes = [1, 4], strides = [1, 1]} : vector<1x16xf32> to vector<1x4xf32>
    %42 = vector.extract_strided_slice %38 {offsets = [0, 12], sizes = [1, 4], strides = [1, 1]} : vector<1x16xf32> to vector<1x4xf32>
    %43 = tpu.concatenate %39, %40, %41, %42 in 0 : vector<1x4xf32>, vector<1x4xf32>, vector<1x4xf32>, vector<1x4xf32> -> vector<4x4xf32>
    %c1 = arith.constant 1 : index
    %c0_13 = arith.constant 0 : index
    %c0_14 = arith.constant 0 : index
    %44 = vector.load %arg4[%c1, %c0_13, %c0_14] : memref<2x3x8xf32, #tpu.memory_space<vmem>>, vector<1x3x8xf32>
    %45 = vector.shape_cast %44 : vector<1x3x8xf32> to vector<3x8xf32>
    %46 = vector.extract_strided_slice %43 {offsets = [0, 3], sizes = [4, 1], strides = [1, 1]} : vector<4x4xf32> to vector<4x1xf32>
    %47 = vector.extract_strided_slice %43 {offsets = [0, 0], sizes = [4, 1], strides = [1, 1]} : vector<4x4xf32> to vector<4x1xf32>
    %48 = vector.extract_strided_slice %45 {offsets = [0, 0], sizes = [1, 8], strides = [1, 1]} : vector<3x8xf32> to vector<1x8xf32>
    %49 = vector.broadcast %47 : vector<4x1xf32> to vector<4x8xf32>
    %50 = vector.broadcast %48 : vector<1x8xf32> to vector<4x8xf32>
    %51 = arith.mulf %49, %50 : vector<4x8xf32>
    %52 = vector.broadcast %46 : vector<4x1xf32> to vector<4x8xf32>
    %53 = arith.addf %52, %51 : vector<4x8xf32>
    %54 = vector.extract_strided_slice %43 {offsets = [0, 1], sizes = [4, 1], strides = [1, 1]} : vector<4x4xf32> to vector<4x1xf32>
    %55 = vector.extract_strided_slice %45 {offsets = [1, 0], sizes = [1, 8], strides = [1, 1]} : vector<3x8xf32> to vector<1x8xf32>
    %56 = vector.broadcast %54 : vector<4x1xf32> to vector<4x8xf32>
    %57 = vector.broadcast %55 : vector<1x8xf32> to vector<4x8xf32>
    %58 = arith.mulf %56, %57 : vector<4x8xf32>
    %59 = arith.addf %53, %58 : vector<4x8xf32>
    %60 = vector.extract_strided_slice %43 {offsets = [0, 2], sizes = [4, 1], strides = [1, 1]} : vector<4x4xf32> to vector<4x1xf32>
    %61 = vector.extract_strided_slice %45 {offsets = [2, 0], sizes = [1, 8], strides = [1, 1]} : vector<3x8xf32> to vector<1x8xf32>
    %62 = vector.broadcast %60 : vector<4x1xf32> to vector<4x8xf32>
    %63 = vector.broadcast %61 : vector<1x8xf32> to vector<4x8xf32>
    %64 = arith.mulf %62, %63 : vector<4x8xf32>
    %65 = arith.addf %59, %64 : vector<4x8xf32>
    %c1_15 = arith.constant 1 : index
    %c0_16 = arith.constant 0 : index
    %c0_17 = arith.constant 0 : index
    %66 = vector.load %arg5[%c1_15, %c0_16, %c0_17] : memref<2x4x8xf32, #tpu.memory_space<vmem>>, vector<1x4x8xf32>
    %67 = vector.shape_cast %66 : vector<1x4x8xf32> to vector<4x8xf32>
    %68 = vector.shape_cast %65 : vector<4x8xf32> to vector<1x4x8xf32>
    tpu.vector_store %arg5[%c1_15, %c0_16, %c0_17], %68 {strides = array<i32>} : memref<2x4x8xf32, #tpu.memory_space<vmem>>, vector<1x4x8xf32>,
    return
  }
  func.func @transform_0(%arg0: i32) -> (i32, i32) {
    %c0_i32 = arith.constant 0 : i32
    %c0_i32_0 = arith.constant 0 : i32
    return %arg0, %c0_i32 : i32, i32
  }
  func.func @transform_1(%arg0: i32) -> (i32, i32) {
    %c0_i32 = arith.constant 0 : i32
    %c0_i32_0 = arith.constant 0 : i32
    %c0_i32_1 = arith.constant 0 : i32
    return %c0_i32, %c0_i32_0 : i32, i32
  }
  func.func @transform_2(%arg0: i32) -> (i32, i32) {
    %c0_i32 = arith.constant 0 : i32
    %c0_i32_0 = arith.constant 0 : i32
    %c0_i32_1 = arith.constant 0 : i32
    return %c0_i32, %c0_i32_0 : i32, i32
  }
  func.func @transform_3(%arg0: i32) -> (i32, i32, i32) {
    %c0_i32 = arith.constant 0 : i32
    %c0_i32_0 = arith.constant 0 : i32
    %c0_i32_1 = arith.constant 0 : i32
    return %arg0, %c0_i32, %c0_i32_0 : i32, i32, i32
  }
  func.func @transform_4(%arg0: i32) -> (i32, i32, i32) {
    %c0_i32 = arith.constant 0 : i32
    %c0_i32_0 = arith.constant 0 : i32
    %c0_i32_1 = arith.constant 0 : i32
    return %arg0, %c0_i32, %c0_i32_0 : i32, i32, i32
  }
  func.func @transform_5(%arg0: i32) -> (i32, i32) {
    %c0_i32 = arith.constant 0 : i32
    %c0_i32_0 = arith.constant 0 : i32
    return %arg0, %c0_i32 : i32, i32
  }
}

</mosaic_0001>

<llo_original>
// kernel: tpu_custom_call.1
$region0: #{tpu_custom_call.1}
  #allocation0 [shape = 'u32[]', space=smem, size = 0x4, offset = 0x4, fixed_abs, tag = 'smem constant byte address 0x4 - core index']
  #allocation1 [shape = 'u32[144,128]{1,0:T(1,128)}', space=vmem, size = 0x12000, scoped, tag = 'internal scratch']
  %s0 = inlined_call_operand.vmem [shape: f32[2,2048], index: 0, kind: input, shape index: {}]
  %s1 = inlined_call_operand.vmem [shape: f32[2048,16], index: 1, kind: input, shape index: {}]
  %s2 = inlined_call_operand.vmem [shape: f32[1,16], index: 2, kind: input, shape index: {}]
  %s3 = inlined_call_operand.vmem [shape: f32[2,3,8], index: 3, kind: input, shape index: {}]
  %s4 = inlined_call_operand.hbm [shape: f32[2,4,8], index: 4, kind: output, shape index: {0}]
  %s5 = inlined_call_operand.hbm [shape: f32[2,16], index: 5, kind: output, shape index: {1}]
  %6 = xla_tuple %s4, %s5
  %s7 = sld [smem:[#allocation0]]
  $region34: #{tpu_custom_call.1} parent=0
    _
  %s9 = ssub.s32 1, %s7
  %s10 = scalar_select 0, %s9, %s7
  $region1: #{tpu_custom_call.1} parent=0
    #allocation2 [shape = 'u8[4096]{0}', space=vmem, size = 0x1000, scoped, tag = 'output window, operand 0, single buffered']
    #allocation3 [shape = 's32[1]{0}', space=sflag, size = 0x4, scoped, tag = 'scoped memory for tpu_custom_call.1']
    #allocation4 [shape = 'u8[1024]{0}', space=vmem, size = 0x400, scoped, tag = 'output window, operand 1, single buffered']
    #allocation5 [shape = 's32[1]{0}', space=sflag, size = 0x4, scoped, tag = 'scoped memory for tpu_custom_call.1']
    %11 = vsyncpa [#allocation3], 0
    %12 = vsyncpa [#allocation5], 0
    // Predicated region
    $region2: #{tpu_custom_call.1} parent=1 // pred_check
      _
    $region3: #{tpu_custom_call.1} parent=1 // pred_check_branch
      %14 = sbr.rel (0) target = $region5
    $region4: #{tpu_custom_call.1} parent=1 // pred_region
      _
    $region5: #{tpu_custom_call.1} parent=1 // pred_fallthru
      _
    // Predicated region
    $region6: #{tpu_custom_call.1} parent=1 // pred_check
      _
    $region7: #{tpu_custom_call.1} parent=1 // pred_check_branch
      %16 = sbr.rel (0) target = $region9
    $region8: #{tpu_custom_call.1} parent=1 // pred_region
      _
    $region9: #{tpu_custom_call.1} parent=1 // pred_fallthru
      _
    // Predicated region
    $region10: #{tpu_custom_call.1} parent=1 // pred_check
      _
    $region11: #{tpu_custom_call.1} parent=1 // pred_check_branch
      %18 = sbr.rel (0) target = $region13
    $region12: #{tpu_custom_call.1} parent=1 // pred_region
      _
    $region13: #{tpu_custom_call.1} parent=1 // pred_fallthru
      _
    // Predicated region
    $region14: #{tpu_custom_call.1} parent=1 // pred_check
      _
    $region15: #{tpu_custom_call.1} parent=1 // pred_check_branch
      %20 = sbr.rel (0) target = $region17
    $region16: #{tpu_custom_call.1} parent=1 // pred_region
      _
    $region17: #{tpu_custom_call.1} parent=1 // pred_fallthru
      _
    %v21 = vld [vmem:[%s0] sm:$0xff]
    %v22 = vld [vmem:[%s0 + $0x8] sm:$0xff]
    %v23 = vld [vmem:[%s0 + $0x10] sm:$0xff]
    %v24 = vld [vmem:[%s0 + $0x18] sm:$0xff]
    %v25 = vld [vmem:[%s1] sm:$0xff]
    %v26 = vld [vmem:[%s1 + $0x8] sm:$0xff]
    %v27 = vld [vmem:[%s1 + $0x10] sm:$0xff]
    %v28 = vld [vmem:[%s1 + $0x18] sm:$0xff]
    %v29 = vld [vmem:[%s1 + $0x20] sm:$0xff]
    %v30 = vld [vmem:[%s1 + $0x28] sm:$0xff]
    %v31 = vld [vmem:[%s1 + $0x30] sm:$0xff]
    %v32 = vld [vmem:[%s1 + $0x38] sm:$0xff]
    %v33 = vld [vmem:[%s1 + $0x40] sm:$0xff]
    %v34 = vld [vmem:[%s1 + $0x48] sm:$0xff]
    %v35 = vld [vmem:[%s1 + $0x50] sm:$0xff]
    %v36 = vld [vmem:[%s1 + $0x58] sm:$0xff]
    %v37 = vld [vmem:[%s1 + $0x60] sm:$0xff]
    %v38 = vld [vmem:[%s1 + $0x68] sm:$0xff]
    %v39 = vld [vmem:[%s1 + $0x70] sm:$0xff]
    %v40 = vld [vmem:[%s1 + $0x78] sm:$0xff]
    %v41 = vld [vmem:[%s1 + $0x80] sm:$0xff]
    %v42 = vld [vmem:[%s1 + $0x88] sm:$0xff]
    %v43 = vld [vmem:[%s1 + $0x90] sm:$0xff]
    %v44 = vld [vmem:[%s1 + $0x98] sm:$0xff]
    %v45 = vld [vmem:[%s1 + $0xa0] sm:$0xff]
    %v46 = vld [vmem:[%s1 + $0xa8] sm:$0xff]
    %v47 = vld [vmem:[%s1 + $0xb0] sm:$0xff]
    %v48 = vld [vmem:[%s1 + $0xb8] sm:$0xff]
    %v49 = vld [vmem:[%s1 + $0xc0] sm:$0xff]
    %v50 = vld [vmem:[%s1 + $0xc8] sm:$0xff]
    %v51 = vld [vmem:[%s1 + $0xd0] sm:$0xff]
    %v52 = vld [vmem:[%s1 + $0xd8] sm:$0xff]
    %v53 = vld [vmem:[%s1 + $0xe0] sm:$0xff]
    %v54 = vld [vmem:[%s1 + $0xe8] sm:$0xff]
    %v55 = vld [vmem:[%s1 + $0xf0] sm:$0xff]
    %v56 = vld [vmem:[%s1 + $0xf8] sm:$0xff]
    %v57 = vld [vmem:[%s1 + $0x100] sm:$0xff]
    %v58 = vld [vmem:[%s1 + $0x108] sm:$0xff]
    %v59 = vld [vmem:[%s1 + $0x110] sm:$0xff]
    %v60 = vld [vmem:[%s1 + $0x118] sm:$0xff]
    %v61 = vld [vmem:[%s1 + $0x120] sm:$0xff]
    %v62 = vld [vmem:[%s1 + $0x128] sm:$0xff]
    %v63 = vld [vmem:[%s1 + $0x130] sm:$0xff]
    %v64 = vld [vmem:[%s1 + $0x138] sm:$0xff]
    %v65 = vld [vmem:[%s1 + $0x140] sm:$0xff]
    %v66 = vld [vmem:[%s1 + $0x148] sm:$0xff]
    %v67 = vld [vmem:[%s1 + $0x150] sm:$0xff]
    %v68 = vld [vmem:[%s1 + $0x158] sm:$0xff]
    %v69 = vld [vmem:[%s1 + $0x160] sm:$0xff]
    %v70 = vld [vmem:[%s1 + $0x168] sm:$0xff]
    %v71 = vld [vmem:[%s1 + $0x170] sm:$0xff]
    %v72 = vld [vmem:[%s1 + $0x178] sm:$0xff]
    %v73 = vld [vmem:[%s1 + $0x180] sm:$0xff]
    %v74 = vld [vmem:[%s1 + $0x188] sm:$0xff]
    %v75 = vld [vmem:[%s1 + $0x190] sm:$0xff]
    %v76 = vld [vmem:[%s1 + $0x198] sm:$0xff]
    %v77 = vld [vmem:[%s1 + $0x1a0] sm:$0xff]
    %v78 = vld [vmem:[%s1 + $0x1a8] sm:$0xff]
    %v79 = vld [vmem:[%s1 + $0x1b0] sm:$0xff]
    %v80 = vld [vmem:[%s1 + $0x1b8] sm:$0xff]
    %v81 = vld [vmem:[%s1 + $0x1c0] sm:$0xff]
    %v82 = vld [vmem:[%s1 + $0x1c8] sm:$0xff]
    %v83 = vld [vmem:[%s1 + $0x1d0] sm:$0xff]
    %v84 = vld [vmem:[%s1 + $0x1d8] sm:$0xff]
    %v85 = vld [vmem:[%s1 + $0x1e0] sm:$0xff]
    %v86 = vld [vmem:[%s1 + $0x1e8] sm:$0xff]
    %v87 = vld [vmem:[%s1 + $0x1f0] sm:$0xff]
    %v88 = vld [vmem:[%s1 + $0x1f8] sm:$0xff]
    %v89 = vld [vmem:[%s1 + $0x200] sm:$0xff]
    %v90 = vld [vmem:[%s1 + $0x208] sm:$0xff]
    %v91 = vld [vmem:[%s1 + $0x210] sm:$0xff]
    %v92 = vld [vmem:[%s1 + $0x218] sm:$0xff]
    %v93 = vld [vmem:[%s1 + $0x220] sm:$0xff]
    %v94 = vld [vmem:[%s1 + $0x228] sm:$0xff]
    %v95 = vld [vmem:[%s1 + $0x230] sm:$0xff]
    %v96 = vld [vmem:[%s1 + $0x238] sm:$0xff]
    %v97 = vld [vmem:[%s1 + $0x240] sm:$0xff]
    %v98 = vld [vmem:[%s1 + $0x248] sm:$0xff]
    %v99 = vld [vmem:[%s1 + $0x250] sm:$0xff]
    %v100 = vld [vmem:[%s1 + $0x258] sm:$0xff]
    %v101 = vld [vmem:[%s1 + $0x260] sm:$0xff]
    %v102 = vld [vmem:[%s1 + $0x268] sm:$0xff]
    %v103 = vld [vmem:[%s1 + $0x270] sm:$0xff]
    %v104 = vld [vmem:[%s1 + $0x278] sm:$0xff]
    %v105 = vld [vmem:[%s1 + $0x280] sm:$0xff]
    %v106 = vld [vmem:[%s1 + $0x288] sm:$0xff]
    %v107 = vld [vmem:[%s1 + $0x290] sm:$0xff]
    %v108 = vld [vmem:[%s1 + $0x298] sm:$0xff]
    %v109 = vld [vmem:[%s1 + $0x2a0] sm:$0xff]
    %v110 = vld [vmem:[%s1 + $0x2a8] sm:$0xff]
    %v111 = vld [vmem:[%s1 + $0x2b0] sm:$0xff]
    %v112 = vld [vmem:[%s1 + $0x2b8] sm:$0xff]
    %v113 = vld [vmem:[%s1 + $0x2c0] sm:$0xff]
    %v114 = vld [vmem:[%s1 + $0x2c8] sm:$0xff]
    %v115 = vld [vmem:[%s1 + $0x2d0] sm:$0xff]
    %v116 = vld [vmem:[%s1 + $0x2d8] sm:$0xff]
    %v117 = vld [vmem:[%s1 + $0x2e0] sm:$0xff]
    %v118 = vld [vmem:[%s1 + $0x2e8] sm:$0xff]
    %v119 = vld [vmem:[%s1 + $0x2f0] sm:$0xff]
    %v120 = vld [vmem:[%s1 + $0x2f8] sm:$0xff]
    %v121 = vld [vmem:[%s1 + $0x300] sm:$0xff]
    %v122 = vld [vmem:[%s1 + $0x308] sm:$0xff]
    %v123 = vld [vmem:[%s1 + $0x310] sm:$0xff]
    %v124 = vld [vmem:[%s1 + $0x318] sm:$0xff]
    %v125 = vld [vmem:[%s1 + $0x320] sm:$0xff]
    %v126 = vld [vmem:[%s1 + $0x328] sm:$0xff]
    %v127 = vld [vmem:[%s1 + $0x330] sm:$0xff]
    %v128 = vld [vmem:[%s1 + $0x338] sm:$0xff]
    %v129 = vld [vmem:[%s1 + $0x340] sm:$0xff]
    %v130 = vld [vmem:[%s1 + $0x348] sm:$0xff]
    %v131 = vld [vmem:[%s1 + $0x350] sm:$0xff]
    %v132 = vld [vmem:[%s1 + $0x358] sm:$0xff]
    %v133 = vld [vmem:[%s1 + $0x360] sm:$0xff]
    %v134 = vld [vmem:[%s1 + $0x368] sm:$0xff]
    %v135 = vld [vmem:[%s1 + $0x370] sm:$0xff]
    %v136 = vld [vmem:[%s1 + $0x378] sm:$0xff]
    %v137 = vld [vmem:[%s1 + $0x380] sm:$0xff]
    %v138 = vld [vmem:[%s1 + $0x388] sm:$0xff]
    %v139 = vld [vmem:[%s1 + $0x390] sm:$0xff]
    %v140 = vld [vmem:[%s1 + $0x398] sm:$0xff]
    %v141 = vld [vmem:[%s1 + $0x3a0] sm:$0xff]
    %v142 = vld [vmem:[%s1 + $0x3a8] sm:$0xff]
    %v143 = vld [vmem:[%s1 + $0x3b0] sm:$0xff]
    %v144 = vld [vmem:[%s1 + $0x3b8] sm:$0xff]
    %v145 = vld [vmem:[%s1 + $0x3c0] sm:$0xff]
    %v146 = vld [vmem:[%s1 + $0x3c8] sm:$0xff]
    %v147 = vld [vmem:[%s1 + $0x3d0] sm:$0xff]
    %v148 = vld [vmem:[%s1 + $0x3d8] sm:$0xff]
    %v149 = vld [vmem:[%s1 + $0x3e0] sm:$0xff]
    %v150 = vld [vmem:[%s1 + $0x3e8] sm:$0xff]
    %v151 = vld [vmem:[%s1 + $0x3f0] sm:$0xff]
    %v152 = vld [vmem:[%s1 + $0x3f8] sm:$0xff]
    %v153 = vld [vmem:[%s1 + $0x400] sm:$0xff]
    %v154 = vld [vmem:[%s1 + $0x408] sm:$0xff]
    %v155 = vld [vmem:[%s1 + $0x410] sm:$0xff]
    %v156 = vld [vmem:[%s1 + $0x418] sm:$0xff]
    %v157 = vld [vmem:[%s1 + $0x420] sm:$0xff]
    %v158 = vld [vmem:[%s1 + $0x428] sm:$0xff]
    %v159 = vld [vmem:[%s1 + $0x430] sm:$0xff]
    %v160 = vld [vmem:[%s1 + $0x438] sm:$0xff]
    %v161 = vld [vmem:[%s1 + $0x440] sm:$0xff]
    %v162 = vld [vmem:[%s1 + $0x448] sm:$0xff]
    %v163 = vld [vmem:[%s1 + $0x450] sm:$0xff]
    %v164 = vld [vmem:[%s1 + $0x458] sm:$0xff]
    %v165 = vld [vmem:[%s1 + $0x460] sm:$0xff]
    %v166 = vld [vmem:[%s1 + $0x468] sm:$0xff]
    %v167 = vld [vmem:[%s1 + $0x470] sm:$0xff]
    %v168 = vld [vmem:[%s1 + $0x478] sm:$0xff]
    %v169 = vld [vmem:[%s1 + $0x480] sm:$0xff]
    %v170 = vld [vmem:[%s1 + $0x488] sm:$0xff]
    %v171 = vld [vmem:[%s1 + $0x490] sm:$0xff]
    %v172 = vld [vmem:[%s1 + $0x498] sm:$0xff]
    %v173 = vld [vmem:[%s1 + $0x4a0] sm:$0xff]
    %v174 = vld [vmem:[%s1 + $0x4a8] sm:$0xff]
    %v175 = vld [vmem:[%s1 + $0x4b0] sm:$0xff]
    %v176 = vld [vmem:[%s1 + $0x4b8] sm:$0xff]
    %v177 = vld [vmem:[%s1 + $0x4c0] sm:$0xff]
    %v178 = vld [vmem:[%s1 + $0x4c8] sm:$0xff]
    %v179 = vld [vmem:[%s1 + $0x4d0] sm:$0xff]
    %v180 = vld [vmem:[%s1 + $0x4d8] sm:$0xff]
    %v181 = vld [vmem:[%s1 + $0x4e0] sm:$0xff]
    %v182 = vld [vmem:[%s1 + $0x4e8] sm:$0xff]
    %v183 = vld [vmem:[%s1 + $0x4f0] sm:$0xff]
    %v184 = vld [vmem:[%s1 + $0x4f8] sm:$0xff]
    %v185 = vld [vmem:[%s1 + $0x500] sm:$0xff]
    %v186 = vld [vmem:[%s1 + $0x508] sm:$0xff]
    %v187 = vld [vmem:[%s1 + $0x510] sm:$0xff]
    %v188 = vld [vmem:[%s1 + $0x518] sm:$0xff]
    %v189 = vld [vmem:[%s1 + $0x520] sm:$0xff]
    %v190 = vld [vmem:[%s1 + $0x528] sm:$0xff]
    %v191 = vld [vmem:[%s1 + $0x530] sm:$0xff]
    %v192 = vld [vmem:[%s1 + $0x538] sm:$0xff]
    %v193 = vld [vmem:[%s1 + $0x540] sm:$0xff]
    %v194 = vld [vmem:[%s1 + $0x548] sm:$0xff]
    %v195 = vld [vmem:[%s1 + $0x550] sm:$0xff]
    %v196 = vld [vmem:[%s1 + $0x558] sm:$0xff]
    %v197 = vld [vmem:[%s1 + $0x560] sm:$0xff]
    %v198 = vld [vmem:[%s1 + $0x568] sm:$0xff]
    %v199 = vld [vmem:[%s1 + $0x570] sm:$0xff]
    %v200 = vld [vmem:[%s1 + $0x578] sm:$0xff]
    %v201 = vld [vmem:[%s1 + $0x580] sm:$0xff]
    %v202 = vld [vmem:[%s1 + $0x588] sm:$0xff]
    %v203 = vld [vmem:[%s1 + $0x590] sm:$0xff]
    %v204 = vld [vmem:[%s1 + $0x598] sm:$0xff]
    %v205 = vld [vmem:[%s1 + $0x5a0] sm:$0xff]
    %v206 = vld [vmem:[%s1 + $0x5a8] sm:$0xff]
    %v207 = vld [vmem:[%s1 + $0x5b0] sm:$0xff]
    %v208 = vld [vmem:[%s1 + $0x5b8] sm:$0xff]
    %v209 = vld [vmem:[%s1 + $0x5c0] sm:$0xff]
    %v210 = vld [vmem:[%s1 + $0x5c8] sm:$0xff]
    %v211 = vld [vmem:[%s1 + $0x5d0] sm:$0xff]
    %v212 = vld [vmem:[%s1 + $0x5d8] sm:$0xff]
    %v213 = vld [vmem:[%s1 + $0x5e0] sm:$0xff]
    %v214 = vld [vmem:[%s1 + $0x5e8] sm:$0xff]
    %v215 = vld [vmem:[%s1 + $0x5f0] sm:$0xff]
    %v216 = vld [vmem:[%s1 + $0x5f8] sm:$0xff]
    %v217 = vld [vmem:[%s1 + $0x600] sm:$0xff]
    %v218 = vld [vmem:[%s1 + $0x608] sm:$0xff]
    %v219 = vld [vmem:[%s1 + $0x610] sm:$0xff]
    %v220 = vld [vmem:[%s1 + $0x618] sm:$0xff]
    %v221 = vld [vmem:[%s1 + $0x620] sm:$0xff]
    %v222 = vld [vmem:[%s1 + $0x628] sm:$0xff]
    %v223 = vld [vmem:[%s1 + $0x630] sm:$0xff]
    %v224 = vld [vmem:[%s1 + $0x638] sm:$0xff]
    %v225 = vld [vmem:[%s1 + $0x640] sm:$0xff]
    %v226 = vld [vmem:[%s1 + $0x648] sm:$0xff]
    %v227 = vld [vmem:[%s1 + $0x650] sm:$0xff]
    %v228 = vld [vmem:[%s1 + $0x658] sm:$0xff]
    %v229 = vld [vmem:[%s1 + $0x660] sm:$0xff]
    %v230 = vld [vmem:[%s1 + $0x668] sm:$0xff]
    %v231 = vld [vmem:[%s1 + $0x670] sm:$0xff]
    %v232 = vld [vmem:[%s1 + $0x678] sm:$0xff]
    %v233 = vld [vmem:[%s1 + $0x680] sm:$0xff]
    %v234 = vld [vmem:[%s1 + $0x688] sm:$0xff]
    %v235 = vld [vmem:[%s1 + $0x690] sm:$0xff]
    %v236 = vld [vmem:[%s1 + $0x698] sm:$0xff]
    %v237 = vld [vmem:[%s1 + $0x6a0] sm:$0xff]
    %v238 = vld [vmem:[%s1 + $0x6a8] sm:$0xff]
    %v239 = vld [vmem:[%s1 + $0x6b0] sm:$0xff]
    %v240 = vld [vmem:[%s1 + $0x6b8] sm:$0xff]
    %v241 = vld [vmem:[%s1 + $0x6c0] sm:$0xff]
    %v242 = vld [vmem:[%s1 + $0x6c8] sm:$0xff]
    %v243 = vld [vmem:[%s1 + $0x6d0] sm:$0xff]
    %v244 = vld [vmem:[%s1 + $0x6d8] sm:$0xff]
    %v245 = vld [vmem:[%s1 + $0x6e0] sm:$0xff]
    %v246 = vld [vmem:[%s1 + $0x6e8] sm:$0xff]
    %v247 = vld [vmem:[%s1 + $0x6f0] sm:$0xff]
    %v248 = vld [vmem:[%s1 + $0x6f8] sm:$0xff]
    %v249 = vld [vmem:[%s1 + $0x700] sm:$0xff]
    %v250 = vld [vmem:[%s1 + $0x708] sm:$0xff]
    %v251 = vld [vmem:[%s1 + $0x710] sm:$0xff]
    %v252 = vld [vmem:[%s1 + $0x718] sm:$0xff]
    %v253 = vld [vmem:[%s1 + $0x720] sm:$0xff]
    %v254 = vld [vmem:[%s1 + $0x728] sm:$0xff]
    %v255 = vld [vmem:[%s1 + $0x730] sm:$0xff]
    %v256 = vld [vmem:[%s1 + $0x738] sm:$0xff]
    %v257 = vld [vmem:[%s1 + $0x740] sm:$0xff]
    %v258 = vld [vmem:[%s1 + $0x748] sm:$0xff]
    %v259 = vld [vmem:[%s1 + $0x750] sm:$0xff]
    %v260 = vld [vmem:[%s1 + $0x758] sm:$0xff]
    %v261 = vld [vmem:[%s1 + $0x760] sm:$0xff]
    %v262 = vld [vmem:[%s1 + $0x768] sm:$0xff]
    %v263 = vld [vmem:[%s1 + $0x770] sm:$0xff]
    %v264 = vld [vmem:[%s1 + $0x778] sm:$0xff]
    %v265 = vld [vmem:[%s1 + $0x780] sm:$0xff]
    %v266 = vld [vmem:[%s1 + $0x788] sm:$0xff]
    %v267 = vld [vmem:[%s1 + $0x790] sm:$0xff]
    %v268 = vld [vmem:[%s1 + $0x798] sm:$0xff]
    %v269 = vld [vmem:[%s1 + $0x7a0] sm:$0xff]
    %v270 = vld [vmem:[%s1 + $0x7a8] sm:$0xff]
    %v271 = vld [vmem:[%s1 + $0x7b0] sm:$0xff]
    %v272 = vld [vmem:[%s1 + $0x7b8] sm:$0xff]
    %v273 = vld [vmem:[%s1 + $0x7c0] sm:$0xff]
    %v274 = vld [vmem:[%s1 + $0x7c8] sm:$0xff]
    %v275 = vld [vmem:[%s1 + $0x7d0] sm:$0xff]
    %v276 = vld [vmem:[%s1 + $0x7d8] sm:$0xff]
    %v277 = vld [vmem:[%s1 + $0x7e0] sm:$0xff]
    %v278 = vld [vmem:[%s1 + $0x7e8] sm:$0xff]
    %v279 = vld [vmem:[%s1 + $0x7f0] sm:$0xff]
    %v280 = vld [vmem:[%s1 + $0x7f8] sm:$0xff]
    %v281 = vld [vmem:[%s2] sm:$0x1]
    %v283 = vlaneseq
    %v284 = vshrl.u32 %v283, 7
    %v285 = vsub.s32 0, %v284
    %v286 = vrot.slane %v281, %v285
    %v292 = vcombine.high %v21, %v21
    %v294 = vunpack.c.l.s4 1983009808
    %v295 = vunpack.c.0.s8 %v294
    %v296 = vlaneseq
    %v297 = vshrl.u32 %v296, 7
    %v298 = vsub.s32 %v295, %v297
    %v299 = vrot.slane %v21, %v298
    %v301 = vunpack.c.l.s4 1983009808
    %v302 = vunpack.c.0.s8 %v301
    %v303 = vlaneseq
    %v304 = vshrl.u32 %v303, 7
    %v305 = vsub.s32 %v302, %v304
    %v306 = vrot.slane %v292, %v305
    %v307 = vcombine.high %v299, %v299
    %v308 = vcombine.high %v306, %v306
    %v309 = vcombine.high %v22, %v22
    %v311 = vunpack.c.l.s4 1983009808
    %v312 = vunpack.c.0.s8 %v311
    %v313 = vlaneseq
    %v314 = vshrl.u32 %v313, 7
    %v315 = vsub.s32 %v312, %v314
    %v316 = vrot.slane %v22, %v315
    %v318 = vunpack.c.l.s4 1983009808
    %v319 = vunpack.c.0.s8 %v318
    %v320 = vlaneseq
    %v321 = vshrl.u32 %v320, 7
    %v322 = vsub.s32 %v319, %v321
    %v323 = vrot.slane %v309, %v322
    %v324 = vcombine.high %v316, %v316
    %v325 = vcombine.high %v323, %v323
    %v326 = vcombine.high %v23, %v23
    %v328 = vunpack.c.l.s4 1983009808
    %v329 = vunpack.c.0.s8 %v328
    %v330 = vlaneseq
    %v331 = vshrl.u32 %v330, 7
    %v332 = vsub.s32 %v329, %v331
    %v333 = vrot.slane %v23, %v332
    %v335 = vunpack.c.l.s4 1983009808
    %v336 = vunpack.c.0.s8 %v335
    %v337 = vlaneseq
    %v338 = vshrl.u32 %v337, 7
    %v339 = vsub.s32 %v336, %v338
    %v340 = vrot.slane %v326, %v339
    %v341 = vcombine.high %v333, %v333
    %v342 = vcombine.high %v340, %v340
    %v343 = vcombine.high %v24, %v24
    %v345 = vunpack.c.l.s4 1983009808
    %v346 = vunpack.c.0.s8 %v345
    %v347 = vlaneseq
    %v348 = vshrl.u32 %v347, 7
    %v349 = vsub.s32 %v346, %v348
    %v350 = vrot.slane %v24, %v349
    %v352 = vunpack.c.l.s4 1983009808
    %v353 = vunpack.c.0.s8 %v352
    %v354 = vlaneseq
    %v355 = vshrl.u32 %v354, 7
    %v356 = vsub.s32 %v353, %v355
    %v357 = vrot.slane %v343, %v356
    %v358 = vcombine.high %v350, %v350
    %v359 = vcombine.high %v357, %v357
    %376 = vmatprep.subr.mxu0 0.0
    %377 = vmatpush1.msra.mxu0 %v25
    %378 = vmatprep.subr.mxu0 0.0
    %379 = vmatpush1.msra.mxu0 %v26
    %380 = vmatprep.subr.mxu0 0.0
    %381 = vmatpush1.msra.mxu0 %v27
    %382 = vmatprep.subr.mxu0 0.0
    %383 = vmatpush1.msra.mxu0 %v28
    %384 = vmatprep.subr.mxu0 0.0
    %385 = vmatpush1.msra.mxu0 %v29
    %386 = vmatprep.subr.mxu0 0.0
    %387 = vmatpush1.msra.mxu0 %v30
    %388 = vmatprep.subr.mxu0 0.0
    %389 = vmatpush1.msra.mxu0 %v31
    %390 = vmatprep.subr.mxu0 0.0
    %391 = vmatpush1.msra.mxu0 %v32
    %392 = vmatprep.subr.mxu0 0.0
    %393 = vmatpush1.msra.mxu0 %v33
    %394 = vmatprep.subr.mxu0 0.0
    %395 = vmatpush1.msra.mxu0 %v34
    %396 = vmatprep.subr.mxu0 0.0
    %397 = vmatpush1.msra.mxu0 %v35
    %398 = vmatprep.subr.mxu0 0.0
    %399 = vmatpush1.msra.mxu0 %v36
    %400 = vmatprep.subr.mxu0 0.0
    %401 = vmatpush1.msra.mxu0 %v37
    %402 = vmatprep.subr.mxu0 0.0
    %403 = vmatpush1.msra.mxu0 %v38
    %404 = vmatprep.subr.mxu0 0.0
    %405 = vmatpush1.msra.mxu0 %v39
    %406 = vmatprep.subr.mxu0 0.0
    %407 = vmatpush1.msra.mxu0 %v40
    %408 = vmatprep.subr.mxu0 0.0
    %409 = vmatpush1.msra.mxu0 %v41
    %410 = vmatprep.subr.mxu0 0.0
    %411 = vmatpush1.msra.mxu0 %v42
    %412 = vmatprep.subr.mxu0 0.0
    %413 = vmatpush1.msra.mxu0 %v43
    %414 = vmatprep.subr.mxu0 0.0
    %415 = vmatpush1.msra.mxu0 %v44
    %416 = vmatprep.subr.mxu0 0.0
    %417 = vmatpush1.msra.mxu0 %v45
    %418 = vmatprep.subr.mxu0 0.0
    %419 = vmatpush1.msra.mxu0 %v46
    %420 = vmatprep.subr.mxu0 0.0
    %421 = vmatpush1.msra.mxu0 %v47
    %422 = vmatprep.subr.mxu0 0.0
    %423 = vmatpush1.msra.mxu0 %v48
    %424 = vmatprep.subr.mxu0 0.0
    %425 = vmatpush1.msra.mxu0 %v49
    %426 = vmatprep.subr.mxu0 0.0
    %427 = vmatpush1.msra.mxu0 %v50
    %428 = vmatprep.subr.mxu0 0.0
    %429 = vmatpush1.msra.mxu0 %v51
    %430 = vmatprep.subr.mxu0 0.0
    %431 = vmatpush1.msra.mxu0 %v52
    %432 = vmatprep.subr.mxu0 0.0
    %433 = vmatpush1.msra.mxu0 %v53
    %434 = vmatprep.subr.mxu0 0.0
    %435 = vmatpush1.msra.mxu0 %v54
    %436 = vmatprep.subr.mxu0 0.0
    %437 = vmatpush1.msra.mxu0 %v55
    %438 = vmatprep.subr.mxu0 0.0
    %439 = vmatpush1.msra.mxu0 %v56
    %440 = vmatprep.mubr.f32.mxu0 %v307
    %441 = vmatmul.mubr.f32.gmra.mrb[0].mxu0 %v299
    %v442 = vpop.f32.mrb[0].mxu0
    %v443 = vadd.f32 %v286, %v442
    %v444 = vpop.f32.mrb[0].mxu0
    %445 = vdwg.mxu0
    %446 = vmatprep.subr.mxu0 0.0
    %447 = vmatpush1.msra.mxu0 %v57
    %448 = vmatprep.subr.mxu0 0.0
    %449 = vmatpush1.msra.mxu0 %v58
    %450 = vmatprep.subr.mxu0 0.0
    %451 = vmatpush1.msra.mxu0 %v59
    %452 = vmatprep.subr.mxu0 0.0
    %453 = vmatpush1.msra.mxu0 %v60
    %454 = vmatprep.subr.mxu0 0.0
    %455 = vmatpush1.msra.mxu0 %v61
    %456 = vmatprep.subr.mxu0 0.0
    %457 = vmatpush1.msra.mxu0 %v62
    %458 = vmatprep.subr.mxu0 0.0
    %459 = vmatpush1.msra.mxu0 %v63
    %460 = vmatprep.subr.mxu0 0.0
    %461 = vmatpush1.msra.mxu0 %v64
    %462 = vmatprep.subr.mxu0 0.0
    %463 = vmatpush1.msra.mxu0 %v65
    %464 = vmatprep.subr.mxu0 0.0
    %465 = vmatpush1.msra.mxu0 %v66
    %466 = vmatprep.subr.mxu0 0.0
    %467 = vmatpush1.msra.mxu0 %v67
    %468 = vmatprep.subr.mxu0 0.0
    %469 = vmatpush1.msra.mxu0 %v68
    %470 = vmatprep.subr.mxu0 0.0
    %471 = vmatpush1.msra.mxu0 %v69
    %472 = vmatprep.subr.mxu0 0.0
    %473 = vmatpush1.msra.mxu0 %v70
    %474 = vmatprep.subr.mxu0 0.0
    %475 = vmatpush1.msra.mxu0 %v71
    %476 = vmatprep.subr.mxu0 0.0
    %477 = vmatpush1.msra.mxu0 %v72
    %478 = vmatprep.subr.mxu0 0.0
    %479 = vmatpush1.msra.mxu0 %v73
    %480 = vmatprep.subr.mxu0 0.0
    %481 = vmatpush1.msra.mxu0 %v74
    %482 = vmatprep.subr.mxu0 0.0
    %483 = vmatpush1.msra.mxu0 %v75
    %484 = vmatprep.subr.mxu0 0.0
    %485 = vmatpush1.msra.mxu0 %v76
    %486 = vmatprep.subr.mxu0 0.0
    %487 = vmatpush1.msra.mxu0 %v77
    %488 = vmatprep.subr.mxu0 0.0
    %489 = vmatpush1.msra.mxu0 %v78
    %490 = vmatprep.subr.mxu0 0.0
    %491 = vmatpush1.msra.mxu0 %v79
    %492 = vmatprep.subr.mxu0 0.0
    %493 = vmatpush1.msra.mxu0 %v80
    %494 = vmatprep.subr.mxu0 0.0
    %495 = vmatpush1.msra.mxu0 %v81
    %496 = vmatprep.subr.mxu0 0.0
    %497 = vmatpush1.msra.mxu0 %v82
    %498 = vmatprep.subr.mxu0 0.0
    %499 = vmatpush1.msra.mxu0 %v83
    %500 = vmatprep.subr.mxu0 0.0
    %501 = vmatpush1.msra.mxu0 %v84
    %502 = vmatprep.subr.mxu0 0.0
    %503 = vmatpush1.msra.mxu0 %v85
    %504 = vmatprep.subr.mxu0 0.0
    %505 = vmatpush1.msra.mxu0 %v86
    %506 = vmatprep.subr.mxu0 0.0
    %507 = vmatpush1.msra.mxu0 %v87
    %508 = vmatprep.subr.mxu0 0.0
    %509 = vmatpush1.msra.mxu0 %v88
    %510 = vmatprep.mubr.f32.mxu0 %v308
    %511 = vmatmul.mubr.f32.gmra.mrb[0].mxu0 %v306
    %v512 = vpop.f32.mrb[0].mxu0
    %v513 = vadd.f32 %v443, %v512
    %v514 = vpop.f32.mrb[0].mxu0
    %515 = vdwg.mxu0
    %516 = vmatprep.subr.mxu0 0.0
    %517 = vmatpush1.msra.mxu0 %v89
    %518 = vmatprep.subr.mxu0 0.0
    %519 = vmatpush1.msra.mxu0 %v90
    %520 = vmatprep.subr.mxu0 0.0
    %521 = vmatpush1.msra.mxu0 %v91
    %522 = vmatprep.subr.mxu0 0.0
    %523 = vmatpush1.msra.mxu0 %v92
    %524 = vmatprep.subr.mxu0 0.0
    %525 = vmatpush1.msra.mxu0 %v93
    %526 = vmatprep.subr.mxu0 0.0
    %527 = vmatpush1.msra.mxu0 %v94
    %528 = vmatprep.subr.mxu0 0.0
    %529 = vmatpush1.msra.mxu0 %v95
    %530 = vmatprep.subr.mxu0 0.0
    %531 = vmatpush1.msra.mxu0 %v96
    %532 = vmatprep.subr.mxu0 0.0
    %533 = vmatpush1.msra.mxu0 %v97
    %534 = vmatprep.subr.mxu0 0.0
    %535 = vmatpush1.msra.mxu0 %v98
    %536 = vmatprep.subr.mxu0 0.0
    %537 = vmatpush1.msra.mxu0 %v99
    %538 = vmatprep.subr.mxu0 0.0
    %539 = vmatpush1.msra.mxu0 %v100
    %540 = vmatprep.subr.mxu0 0.0
    %541 = vmatpush1.msra.mxu0 %v101
    %542 = vmatprep.subr.mxu0 0.0
    %543 = vmatpush1.msra.mxu0 %v102
    %544 = vmatprep.subr.mxu0 0.0
    %545 = vmatpush1.msra.mxu0 %v103
    %546 = vmatprep.subr.mxu0 0.0
    %547 = vmatpush1.msra.mxu0 %v104
    %548 = vmatprep.subr.mxu0 0.0
    %549 = vmatpush1.msra.mxu0 %v105
    %550 = vmatprep.subr.mxu0 0.0
    %551 = vmatpush1.msra.mxu0 %v106
    %552 = vmatprep.subr.mxu0 0.0
    %553 = vmatpush1.msra.mxu0 %v107
    %554 = vmatprep.subr.mxu0 0.0
    %555 = vmatpush1.msra.mxu0 %v108
    %556 = vmatprep.subr.mxu0 0.0
    %557 = vmatpush1.msra.mxu0 %v109
    %558 = vmatprep.subr.mxu0 0.0
    %559 = vmatpush1.msra.mxu0 %v110
    %560 = vmatprep.subr.mxu0 0.0
    %561 = vmatpush1.msra.mxu0 %v111
    %562 = vmatprep.subr.mxu0 0.0
    %563 = vmatpush1.msra.mxu0 %v112
    %564 = vmatprep.subr.mxu0 0.0
    %565 = vmatpush1.msra.mxu0 %v113
    %566 = vmatprep.subr.mxu0 0.0
    %567 = vmatpush1.msra.mxu0 %v114
    %568 = vmatprep.subr.mxu0 0.0
    %569 = vmatpush1.msra.mxu0 %v115
    %570 = vmatprep.subr.mxu0 0.0
    %571 = vmatpush1.msra.mxu0 %v116
    %572 = vmatprep.subr.mxu0 0.0
    %573 = vmatpush1.msra.mxu0 %v117
    %574 = vmatprep.subr.mxu0 0.0
    %575 = vmatpush1.msra.mxu0 %v118
    %576 = vmatprep.subr.mxu0 0.0
    %577 = vmatpush1.msra.mxu0 %v119
    %578 = vmatprep.subr.mxu0 0.0
    %579 = vmatpush1.msra.mxu0 %v120
    %580 = vmatprep.mubr.f32.mxu0 %v324
    %581 = vmatmul.mubr.f32.gmra.mrb[0].mxu0 %v316
    %v582 = vpop.f32.mrb[0].mxu0
    %v583 = vadd.f32 %v513, %v582
    %v584 = vpop.f32.mrb[0].mxu0
    %585 = vdwg.mxu0
    %586 = vmatprep.subr.mxu0 0.0
    %587 = vmatpush1.msra.mxu0 %v121
    %588 = vmatprep.subr.mxu0 0.0
    %589 = vmatpush1.msra.mxu0 %v122
    %590 = vmatprep.subr.mxu0 0.0
    %591 = vmatpush1.msra.mxu0 %v123
    %592 = vmatprep.subr.mxu0 0.0
    %593 = vmatpush1.msra.mxu0 %v124
    %594 = vmatprep.subr.mxu0 0.0
    %595 = vmatpush1.msra.mxu0 %v125
    %596 = vmatprep.subr.mxu0 0.0
    %597 = vmatpush1.msra.mxu0 %v126
    %598 = vmatprep.subr.mxu0 0.0
    %599 = vmatpush1.msra.mxu0 %v127
    %600 = vmatprep.subr.mxu0 0.0
    %601 = vmatpush1.msra.mxu0 %v128
    %602 = vmatprep.subr.mxu0 0.0
    %603 = vmatpush1.msra.mxu0 %v129
    %604 = vmatprep.subr.mxu0 0.0
    %605 = vmatpush1.msra.mxu0 %v130
    %606 = vmatprep.subr.mxu0 0.0
    %607 = vmatpush1.msra.mxu0 %v131
    %608 = vmatprep.subr.mxu0 0.0
    %609 = vmatpush1.msra.mxu0 %v132
    %610 = vmatprep.subr.mxu0 0.0
    %611 = vmatpush1.msra.mxu0 %v133
    %612 = vmatprep.subr.mxu0 0.0
    %613 = vmatpush1.msra.mxu0 %v134
    %614 = vmatprep.subr.mxu0 0.0
    %615 = vmatpush1.msra.mxu0 %v135
    %616 = vmatprep.subr.mxu0 0.0
    %617 = vmatpush1.msra.mxu0 %v136
    %618 = vmatprep.subr.mxu0 0.0
    %619 = vmatpush1.msra.mxu0 %v137
    %620 = vmatprep.subr.mxu0 0.0
    %621 = vmatpush1.msra.mxu0 %v138
    %622 = vmatprep.subr.mxu0 0.0
    %623 = vmatpush1.msra.mxu0 %v139
    %624 = vmatprep.subr.mxu0 0.0
    %625 = vmatpush1.msra.mxu0 %v140
    %626 = vmatprep.subr.mxu0 0.0
    %627 = vmatpush1.msra.mxu0 %v141
    %628 = vmatprep.subr.mxu0 0.0
    %629 = vmatpush1.msra.mxu0 %v142
    %630 = vmatprep.subr.mxu0 0.0
    %631 = vmatpush1.msra.mxu0 %v143
    %632 = vmatprep.subr.mxu0 0.0
    %633 = vmatpush1.msra.mxu0 %v144
    %634 = vmatprep.subr.mxu0 0.0
    %635 = vmatpush1.msra.mxu0 %v145
    %636 = vmatprep.subr.mxu0 0.0
    %637 = vmatpush1.msra.mxu0 %v146
    %638 = vmatprep.subr.mxu0 0.0
    %639 = vmatpush1.msra.mxu0 %v147
    %640 = vmatprep.subr.mxu0 0.0
    %641 = vmatpush1.msra.mxu0 %v148
    %642 = vmatprep.subr.mxu0 0.0
    %643 = vmatpush1.msra.mxu0 %v149
    %644 = vmatprep.subr.mxu0 0.0
    %645 = vmatpush1.msra.mxu0 %v150
    %646 = vmatprep.subr.mxu0 0.0
    %647 = vmatpush1.msra.mxu0 %v151
    %648 = vmatprep.subr.mxu0 0.0
    %649 = vmatpush1.msra.mxu0 %v152
    %650 = vmatprep.mubr.f32.mxu0 %v325
    %651 = vmatmul.mubr.f32.gmra.mrb[0].mxu0 %v323
    %v652 = vpop.f32.mrb[0].mxu0
    %v653 = vadd.f32 %v583, %v652
    %v654 = vpop.f32.mrb[0].mxu0
    %655 = vdwg.mxu0
    %656 = vmatprep.subr.mxu0 0.0
    %657 = vmatpush1.msra.mxu0 %v153
    %658 = vmatprep.subr.mxu0 0.0
    %659 = vmatpush1.msra.mxu0 %v154
    %660 = vmatprep.subr.mxu0 0.0
    %661 = vmatpush1.msra.mxu0 %v155
    %662 = vmatprep.subr.mxu0 0.0
    %663 = vmatpush1.msra.mxu0 %v156
    %664 = vmatprep.subr.mxu0 0.0
    %665 = vmatpush1.msra.mxu0 %v157
    %666 = vmatprep.subr.mxu0 0.0
    %667 = vmatpush1.msra.mxu0 %v158
    %668 = vmatprep.subr.mxu0 0.0
    %669 = vmatpush1.msra.mxu0 %v159
    %670 = vmatprep.subr.mxu0 0.0
    %671 = vmatpush1.msra.mxu0 %v160
    %672 = vmatprep.subr.mxu0 0.0
    %673 = vmatpush1.msra.mxu0 %v161
    %674 = vmatprep.subr.mxu0 0.0
    %675 = vmatpush1.msra.mxu0 %v162
    %676 = vmatprep.subr.mxu0 0.0
    %677 = vmatpush1.msra.mxu0 %v163
    %678 = vmatprep.subr.mxu0 0.0
    %679 = vmatpush1.msra.mxu0 %v164
    %680 = vmatprep.subr.mxu0 0.0
    %681 = vmatpush1.msra.mxu0 %v165
    %682 = vmatprep.subr.mxu0 0.0
    %683 = vmatpush1.msra.mxu0 %v166
    %684 = vmatprep.subr.mxu0 0.0
    %685 = vmatpush1.msra.mxu0 %v167
    %686 = vmatprep.subr.mxu0 0.0
    %687 = vmatpush1.msra.mxu0 %v168
    %688 = vmatprep.subr.mxu0 0.0
    %689 = vmatpush1.msra.mxu0 %v169
    %690 = vmatprep.subr.mxu0 0.0
    %691 = vmatpush1.msra.mxu0 %v170
    %692 = vmatprep.subr.mxu0 0.0
    %693 = vmatpush1.msra.mxu0 %v171
    %694 = vmatprep.subr.mxu0 0.0
    %695 = vmatpush1.msra.mxu0 %v172
    %696 = vmatprep.subr.mxu0 0.0
    %697 = vmatpush1.msra.mxu0 %v173
    %698 = vmatprep.subr.mxu0 0.0
    %699 = vmatpush1.msra.mxu0 %v174
    %700 = vmatprep.subr.mxu0 0.0
    %701 = vmatpush1.msra.mxu0 %v175
    %702 = vmatprep.subr.mxu0 0.0
    %703 = vmatpush1.msra.mxu0 %v176
    %704 = vmatprep.subr.mxu0 0.0
    %705 = vmatpush1.msra.mxu0 %v177
    %706 = vmatprep.subr.mxu0 0.0
    %707 = vmatpush1.msra.mxu0 %v178
    %708 = vmatprep.subr.mxu0 0.0
    %709 = vmatpush1.msra.mxu0 %v179
    %710 = vmatprep.subr.mxu0 0.0
    %711 = vmatpush1.msra.mxu0 %v180
    %712 = vmatprep.subr.mxu0 0.0
    %713 = vmatpush1.msra.mxu0 %v181
    %714 = vmatprep.subr.mxu0 0.0
    %715 = vmatpush1.msra.mxu0 %v182
    %716 = vmatprep.subr.mxu0 0.0
    %717 = vmatpush1.msra.mxu0 %v183
    %718 = vmatprep.subr.mxu0 0.0
    %719 = vmatpush1.msra.mxu0 %v184
    %720 = vmatprep.mubr.f32.mxu0 %v341
    %721 = vmatmul.mubr.f32.gmra.mrb[0].mxu0 %v333
    %v722 = vpop.f32.mrb[0].mxu0
    %v723 = vadd.f32 %v653, %v722
    %v724 = vpop.f32.mrb[0].mxu0
    %725 = vdwg.mxu0
    %726 = vmatprep.subr.mxu0 0.0
    %727 = vmatpush1.msra.mxu0 %v185
    %728 = vmatprep.subr.mxu0 0.0
    %729 = vmatpush1.msra.mxu0 %v186
    %730 = vmatprep.subr.mxu0 0.0
    %731 = vmatpush1.msra.mxu0 %v187
    %732 = vmatprep.subr.mxu0 0.0
    %733 = vmatpush1.msra.mxu0 %v188
    %734 = vmatprep.subr.mxu0 0.0
    %735 = vmatpush1.msra.mxu0 %v189
    %736 = vmatprep.subr.mxu0 0.0
    %737 = vmatpush1.msra.mxu0 %v190
    %738 = vmatprep.subr.mxu0 0.0
    %739 = vmatpush1.msra.mxu0 %v191
    %740 = vmatprep.subr.mxu0 0.0
    %741 = vmatpush1.msra.mxu0 %v192
    %742 = vmatprep.subr.mxu0 0.0
    %743 = vmatpush1.msra.mxu0 %v193
    %744 = vmatprep.subr.mxu0 0.0
    %745 = vmatpush1.msra.mxu0 %v194
    %746 = vmatprep.subr.mxu0 0.0
    %747 = vmatpush1.msra.mxu0 %v195
    %748 = vmatprep.subr.mxu0 0.0
    %749 = vmatpush1.msra.mxu0 %v196
    %750 = vmatprep.subr.mxu0 0.0
    %751 = vmatpush1.msra.mxu0 %v197
    %752 = vmatprep.subr.mxu0 0.0
    %753 = vmatpush1.msra.mxu0 %v198
    %754 = vmatprep.subr.mxu0 0.0
    %755 = vmatpush1.msra.mxu0 %v199
    %756 = vmatprep.subr.mxu0 0.0
    %757 = vmatpush1.msra.mxu0 %v200
    %758 = vmatprep.subr.mxu0 0.0
    %759 = vmatpush1.msra.mxu0 %v201
    %760 = vmatprep.subr.mxu0 0.0
    %761 = vmatpush1.msra.mxu0 %v202
    %762 = vmatprep.subr.mxu0 0.0
    %763 = vmatpush1.msra.mxu0 %v203
    %764 = vmatprep.subr.mxu0 0.0
    %765 = vmatpush1.msra.mxu0 %v204
    %766 = vmatprep.subr.mxu0 0.0
    %767 = vmatpush1.msra.mxu0 %v205
    %768 = vmatprep.subr.mxu0 0.0
    %769 = vmatpush1.msra.mxu0 %v206
    %770 = vmatprep.subr.mxu0 0.0
    %771 = vmatpush1.msra.mxu0 %v207
    %772 = vmatprep.subr.mxu0 0.0
    %773 = vmatpush1.msra.mxu0 %v208
    %774 = vmatprep.subr.mxu0 0.0
    %775 = vmatpush1.msra.mxu0 %v209
    %776 = vmatprep.subr.mxu0 0.0
    %777 = vmatpush1.msra.mxu0 %v210
    %778 = vmatprep.subr.mxu0 0.0
    %779 = vmatpush1.msra.mxu0 %v211
    %780 = vmatprep.subr.mxu0 0.0
    %781 = vmatpush1.msra.mxu0 %v212
    %782 = vmatprep.subr.mxu0 0.0
    %783 = vmatpush1.msra.mxu0 %v213
    %784 = vmatprep.subr.mxu0 0.0
    %785 = vmatpush1.msra.mxu0 %v214
    %786 = vmatprep.subr.mxu0 0.0
    %787 = vmatpush1.msra.mxu0 %v215
    %788 = vmatprep.subr.mxu0 0.0
    %789 = vmatpush1.msra.mxu0 %v216
    %790 = vmatprep.mubr.f32.mxu0 %v342
    %791 = vmatmul.mubr.f32.gmra.mrb[0].mxu0 %v340
    %v792 = vpop.f32.mrb[0].mxu0
    %v793 = vadd.f32 %v723, %v792
    %v794 = vpop.f32.mrb[0].mxu0
    %795 = vdwg.mxu0
    %796 = vmatprep.subr.mxu0 0.0
    %797 = vmatpush1.msra.mxu0 %v217
    %798 = vmatprep.subr.mxu0 0.0
    %799 = vmatpush1.msra.mxu0 %v218
    %800 = vmatprep.subr.mxu0 0.0
    %801 = vmatpush1.msra.mxu0 %v219
    %802 = vmatprep.subr.mxu0 0.0
    %803 = vmatpush1.msra.mxu0 %v220
    %804 = vmatprep.subr.mxu0 0.0
    %805 = vmatpush1.msra.mxu0 %v221
    %806 = vmatprep.subr.mxu0 0.0
    %807 = vmatpush1.msra.mxu0 %v222
    %808 = vmatprep.subr.mxu0 0.0
    %809 = vmatpush1.msra.mxu0 %v223
    %810 = vmatprep.subr.mxu0 0.0
    %811 = vmatpush1.msra.mxu0 %v224
    %812 = vmatprep.subr.mxu0 0.0
    %813 = vmatpush1.msra.mxu0 %v225
    %814 = vmatprep.subr.mxu0 0.0
    %815 = vmatpush1.msra.mxu0 %v226
    %816 = vmatprep.subr.mxu0 0.0
    %817 = vmatpush1.msra.mxu0 %v227
    %818 = vmatprep.subr.mxu0 0.0
    %819 = vmatpush1.msra.mxu0 %v228
    %820 = vmatprep.subr.mxu0 0.0
    %821 = vmatpush1.msra.mxu0 %v229
    %822 = vmatprep.subr.mxu0 0.0
    %823 = vmatpush1.msra.mxu0 %v230
    %824 = vmatprep.subr.mxu0 0.0
    %825 = vmatpush1.msra.mxu0 %v231
    %826 = vmatprep.subr.mxu0 0.0
    %827 = vmatpush1.msra.mxu0 %v232
    %828 = vmatprep.subr.mxu0 0.0
    %829 = vmatpush1.msra.mxu0 %v233
    %830 = vmatprep.subr.mxu0 0.0
    %831 = vmatpush1.msra.mxu0 %v234
    %832 = vmatprep.subr.mxu0 0.0
    %833 = vmatpush1.msra.mxu0 %v235
    %834 = vmatprep.subr.mxu0 0.0
    %835 = vmatpush1.msra.mxu0 %v236
    %836 = vmatprep.subr.mxu0 0.0
    %837 = vmatpush1.msra.mxu0 %v237
    %838 = vmatprep.subr.mxu0 0.0
    %839 = vmatpush1.msra.mxu0 %v238
    %840 = vmatprep.subr.mxu0 0.0
    %841 = vmatpush1.msra.mxu0 %v239
    %842 = vmatprep.subr.mxu0 0.0
    %843 = vmatpush1.msra.mxu0 %v240
    %844 = vmatprep.subr.mxu0 0.0
    %845 = vmatpush1.msra.mxu0 %v241
    %846 = vmatprep.subr.mxu0 0.0
    %847 = vmatpush1.msra.mxu0 %v242
    %848 = vmatprep.subr.mxu0 0.0
    %849 = vmatpush1.msra.mxu0 %v243
    %850 = vmatprep.subr.mxu0 0.0
    %851 = vmatpush1.msra.mxu0 %v244
    %852 = vmatprep.subr.mxu0 0.0
    %853 = vmatpush1.msra.mxu0 %v245
    %854 = vmatprep.subr.mxu0 0.0
    %855 = vmatpush1.msra.mxu0 %v246
    %856 = vmatprep.subr.mxu0 0.0
    %857 = vmatpush1.msra.mxu0 %v247
    %858 = vmatprep.subr.mxu0 0.0
    %859 = vmatpush1.msra.mxu0 %v248
    %860 = vmatprep.mubr.f32.mxu0 %v358
    %861 = vmatmul.mubr.f32.gmra.mrb[0].mxu0 %v350
    %v862 = vpop.f32.mrb[0].mxu0
    %v863 = vadd.f32 %v793, %v862
    %v864 = vpop.f32.mrb[0].mxu0
    %865 = vdwg.mxu0
    %866 = vmatprep.subr.mxu0 0.0
    %867 = vmatpush1.msra.mxu0 %v249
    %868 = vmatprep.subr.mxu0 0.0
    %869 = vmatpush1.msra.mxu0 %v250
    %870 = vmatprep.subr.mxu0 0.0
    %871 = vmatpush1.msra.mxu0 %v251
    %872 = vmatprep.subr.mxu0 0.0
    %873 = vmatpush1.msra.mxu0 %v252
    %874 = vmatprep.subr.mxu0 0.0
    %875 = vmatpush1.msra.mxu0 %v253
    %876 = vmatprep.subr.mxu0 0.0
    %877 = vmatpush1.msra.mxu0 %v254
    %878 = vmatprep.subr.mxu0 0.0
    %879 = vmatpush1.msra.mxu0 %v255
    %880 = vmatprep.subr.mxu0 0.0
    %881 = vmatpush1.msra.mxu0 %v256
    %882 = vmatprep.subr.mxu0 0.0
    %883 = vmatpush1.msra.mxu0 %v257
    %884 = vmatprep.subr.mxu0 0.0
    %885 = vmatpush1.msra.mxu0 %v258
    %886 = vmatprep.subr.mxu0 0.0
    %887 = vmatpush1.msra.mxu0 %v259
    %888 = vmatprep.subr.mxu0 0.0
    %889 = vmatpush1.msra.mxu0 %v260
    %890 = vmatprep.subr.mxu0 0.0
    %891 = vmatpush1.msra.mxu0 %v261
    %892 = vmatprep.subr.mxu0 0.0
    %893 = vmatpush1.msra.mxu0 %v262
    %894 = vmatprep.subr.mxu0 0.0
    %895 = vmatpush1.msra.mxu0 %v263
    %896 = vmatprep.subr.mxu0 0.0
    %897 = vmatpush1.msra.mxu0 %v264
    %898 = vmatprep.subr.mxu0 0.0
    %899 = vmatpush1.msra.mxu0 %v265
    %900 = vmatprep.subr.mxu0 0.0
    %901 = vmatpush1.msra.mxu0 %v266
    %902 = vmatprep.subr.mxu0 0.0
    %903 = vmatpush1.msra.mxu0 %v267
    %904 = vmatprep.subr.mxu0 0.0
    %905 = vmatpush1.msra.mxu0 %v268
    %906 = vmatprep.subr.mxu0 0.0
    %907 = vmatpush1.msra.mxu0 %v269
    %908 = vmatprep.subr.mxu0 0.0
    %909 = vmatpush1.msra.mxu0 %v270
    %910 = vmatprep.subr.mxu0 0.0
    %911 = vmatpush1.msra.mxu0 %v271
    %912 = vmatprep.subr.mxu0 0.0
    %913 = vmatpush1.msra.mxu0 %v272
    %914 = vmatprep.subr.mxu0 0.0
    %915 = vmatpush1.msra.mxu0 %v273
    %916 = vmatprep.subr.mxu0 0.0
    %917 = vmatpush1.msra.mxu0 %v274
    %918 = vmatprep.subr.mxu0 0.0
    %919 = vmatpush1.msra.mxu0 %v275
    %920 = vmatprep.subr.mxu0 0.0
    %921 = vmatpush1.msra.mxu0 %v276
    %922 = vmatprep.subr.mxu0 0.0
    %923 = vmatpush1.msra.mxu0 %v277
    %924 = vmatprep.subr.mxu0 0.0
    %925 = vmatpush1.msra.mxu0 %v278
    %926 = vmatprep.subr.mxu0 0.0
    %927 = vmatpush1.msra.mxu0 %v279
    %928 = vmatprep.subr.mxu0 0.0
    %929 = vmatpush1.msra.mxu0 %v280
    %930 = vmatprep.mubr.f32.mxu0 %v359
    %931 = vmatmul.mubr.f32.gmra.mrb[0].mxu0 %v357
    %v932 = vpop.f32.mrb[0].mxu0
    %v933 = vadd.f32 %v863, %v932
    %v934 = vpop.f32.mrb[0].mxu0
    %935 = vdwg.mxu0
    %vm936 = vcmask 123904
    %937 = vst.msk [vmem:[#allocation4] sm:$0x3] %vm936, %v933
    %v939 = vrot.slane %v933, 7
    %940 = vrot.lane.b32.xlu0 %v939, 124
    %v941 = vpop.permute.xlu0 %940
    %v943 = vrot.slane %v933, 6
    %944 = vrot.lane.b32.xlu0 %v943, 120
    %v945 = vpop.permute.xlu0 %944
    %v947 = vrot.slane %v933, 5
    %948 = vrot.lane.b32.xlu0 %v947, 116
    %v949 = vpop.permute.xlu0 %948
    %vm951 = vcmask 1040384
    %v952 = vsel %vm951, %v933, %v941
    %vm953 = vcmask 1041408
    %v954 = vsel %vm953, %v952, %v945
    %vm955 = vcmask 1042432
    %v956 = vsel %vm955, %v954, %v949
    %v957 = vld [vmem:[%s3] sm:$0x7]
    %959 = vset.pattern.permute.xlu0 0
    %960 = vperm.xlu0 %959, %v956
    %v961 = vpop.permute.xlu0 %960
    %v963 = vlaneseq
    %v964 = vshrl.u32 %v963, 7
    %v965 = vsub.s32 0, %v964
    %v966 = vrot.slane %v957, %v965
    %v967 = vmul.f32 %v961, %v966
    %968 = vset.pattern.permute.xlu0 3
    %969 = vperm.xlu0 %968, %v956
    %v970 = vpop.permute.xlu0 %969
    %v972 = vadd.f32 %v970, %v967
    %973 = vset.pattern.permute.xlu0 1
    %974 = vperm.xlu0 %973, %v956
    %v975 = vpop.permute.xlu0 %974
    %v977 = vlaneseq
    %v978 = vshrl.u32 %v977, 7
    %v979 = vsub.s32 1, %v978
    %v980 = vrot.slane %v957, %v979
    %v981 = vmul.f32 %v975, %v980
    %v982 = vadd.f32 %v972, %v981
    %983 = vset.pattern.permute.xlu0 2
    %984 = vperm.xlu0 %983, %v956
    %v985 = vpop.permute.xlu0 %984
    %v987 = vlaneseq
    %v988 = vshrl.u32 %v987, 7
    %v989 = vsub.s32 2, %v988
    %v990 = vrot.slane %v957, %v989
    %v991 = vmul.f32 %v985, %v990
    %v992 = vadd.f32 %v982, %v991
    %vm993 = vcmask 60416
    %994 = vst.msk [vmem:[#allocation2] sm:$0xf] %vm993, %v992
    %v995 = vrot.slane %v933, 1
    %997 = vrot.lane.b32.xlu0 %v933, 124
    %v998 = vpop.permute.xlu0 %997
    %1000 = vrot.lane.b32.xlu0 %v939, 120
    %v1001 = vpop.permute.xlu0 %1000
    %1003 = vrot.lane.b32.xlu0 %v943, 116
    %v1004 = vpop.permute.xlu0 %1003
    %v1006 = vsel %vm951, %v995, %v998
    %v1007 = vsel %vm953, %v1006, %v1001
    %v1008 = vsel %vm955, %v1007, %v1004
    %s1009 = scalar_lea.vmem %s3, 4
    %v1010 = vld [vmem:[%s1009] sm:$0x7]
    %1012 = vset.pattern.permute.xlu0 0
    %1013 = vperm.xlu0 %1012, %v1008
    %v1014 = vpop.permute.xlu0 %1013
    %v1016 = vlaneseq
    %v1017 = vshrl.u32 %v1016, 7
    %v1018 = vsub.s32 0, %v1017
    %v1019 = vrot.slane %v1010, %v1018
    %v1020 = vmul.f32 %v1014, %v1019
    %1021 = vset.pattern.permute.xlu0 3
    %1022 = vperm.xlu0 %1021, %v1008
    %v1023 = vpop.permute.xlu0 %1022
    %v1025 = vadd.f32 %v1023, %v1020
    %1026 = vset.pattern.permute.xlu0 1
    %1027 = vperm.xlu0 %1026, %v1008
    %v1028 = vpop.permute.xlu0 %1027
    %v1030 = vlaneseq
    %v1031 = vshrl.u32 %v1030, 7
    %v1032 = vsub.s32 1, %v1031
    %v1033 = vrot.slane %v1010, %v1032
    %v1034 = vmul.f32 %v1028, %v1033
    %v1035 = vadd.f32 %v1025, %v1034
    %1036 = vset.pattern.permute.xlu0 2
    %1037 = vperm.xlu0 %1036, %v1008
    %v1038 = vpop.permute.xlu0 %1037
    %v1040 = vlaneseq
    %v1041 = vshrl.u32 %v1040, 7
    %v1042 = vsub.s32 2, %v1041
    %v1043 = vrot.slane %v1010, %v1042
    %v1044 = vmul.f32 %v1038, %v1043
    %v1045 = vadd.f32 %v1035, %v1044
    %s1046 = scalar_lea.vmem [#allocation2], 4
    %1047 = vst.msk [vmem:[%s1046] sm:$0xf] %vm993, %v1045
    // Predicated region
    $region18: #{tpu_custom_call.1} parent=1 // pred_check
      _
    $region19: #{tpu_custom_call.1} parent=1 // pred_check_branch
      %1049 = sbr.rel (0) target = $region21
    $region20: #{tpu_custom_call.1} parent=1 // pred_region
      %s1051 = ssub.s32 128, 128
      %1052 = vsyncadd [#allocation3], %s1051
      %s1053 = sshll.u32 [#allocation2], 4
      %s1054 = int_to_ptr.vmem [resolvable:$true] %s1053
      %1059 = dma.vmem_to_hbm [thread:$0]  %s1054, 128, %s4, [#allocation3], 64, 64, 4
    $region21: #{tpu_custom_call.1} parent=1 // pred_fallthru
      _
    // Predicated region
    $region22: #{tpu_custom_call.1} parent=1 // pred_check
      _
    $region23: #{tpu_custom_call.1} parent=1 // pred_check_branch
      %1061 = sbr.rel (0) target = $region25
    $region24: #{tpu_custom_call.1} parent=1 // pred_region
      %s1063 = ssub.s32 32, 32
      %1064 = vsyncadd [#allocation5], %s1063
      %s1066 = sshll.u32 [#allocation4], 4
      %s1067 = int_to_ptr.vmem [resolvable:$true] %s1066
      %1069 = dma.vmem_to_hbm [thread:$0]  %s1067, 32, %s5, [#allocation5]
    $region25: #{tpu_custom_call.1} parent=1 // pred_fallthru
      _
    // Predicated region
    $region26: #{tpu_custom_call.1} parent=1 // pred_check
      _
    $region27: #{tpu_custom_call.1} parent=1 // pred_check_branch
      %1071 = sbr.rel (0) target = $region29
    $region28: #{tpu_custom_call.1} parent=1 // pred_region
      %1072 = dma.done [#allocation3], 128
    $region29: #{tpu_custom_call.1} parent=1 // pred_fallthru
      _
    // Predicated region
    $region30: #{tpu_custom_call.1} parent=1 // pred_check
      _
    $region31: #{tpu_custom_call.1} parent=1 // pred_check_branch
      %1074 = sbr.rel (0) target = $region33
    $region32: #{tpu_custom_call.1} parent=1 // pred_region
      %1075 = dma.done [#allocation5], 32
    $region33: #{tpu_custom_call.1} parent=1 // pred_fallthru
      _
    %1076 = vsyncpa [#allocation3], 1
    %1077 = vsyncpa [#allocation5], 1

</llo_original>
